<compile_context>
chip_gen: v7x
topology: tpu7x:2x2x1
jax: 0.10.0
libtpu: 0.0.40
codegen_flags: <defaults>
</compile_context>

<pallas_src>
import jax
import jax.numpy as jnp
from jax.experimental import pallas as pl
from jax.experimental.pallas import tpu as pltpu


# Finite "minus infinity": exp() underflows to 0 and 0 * _NEG_BIG stays finite
# (a true -inf would produce NaN when multiplied by a zeroed weight).
_NEG_BIG = -1e30


def _make_ce_label_smooth_kernel(num_classes, epsilon, batch, block_b, block_c,
                                 num_c_tiles):
    inv_b = 1.0 / float(batch)
    eps_over_c = float(epsilon) / float(num_classes)
    w_target = 1.0 - float(epsilon) + eps_over_c
    needs_col_mask = num_c_tiles * block_c > num_classes

    def kernel(logits_ref, targets_ref, out_ref, m_sc, s_sc, w_sc):
        bi = pl.program_id(0)          # batch tile   ("parallel")
        ci = pl.program_id(1)          # class chunk  ("arbitrary", innermost)

        @pl.when(ci == 0)
        def _():
            m_sc[...] = jnp.full((block_b, 1), -jnp.inf, jnp.float32)
            s_sc[...] = jnp.zeros((block_b, 1), jnp.float32)
            w_sc[...] = jnp.zeros((block_b, 1), jnp.float32)

        x = logits_ref[...].astype(jnp.float32)                       # (TB, CK)
        tgt = targets_ref[...]                                        # (TB, 1) i32

        # (1, CK) column ids, broadcast against (TB, 1) targets.
        col = ci * block_c + jax.lax.broadcasted_iota(jnp.int32, (1, block_c), 1)

        # Fused smoothing weights: one select + one multiply + one reduction.
        w = jnp.where(col == tgt, w_target, eps_over_c)               # (TB, CK)
        if needs_col_mask:
            # Last class chunk overruns C: neutralize padding columns.
            valid = col < num_classes                                 # (1, CK)
            x = jnp.where(valid, x, _NEG_BIG)   # exp -> 0, max unaffected
            w = jnp.where(valid, w, 0.0)        # 0 * finite -> 0

        w_sc[...] += jnp.sum(w * x, axis=1, keepdims=True)

        # Online (flash-style) log-sum-exp along class chunks.
        m_prev = m_sc[...]
        m_new = jnp.maximum(m_prev, jnp.max(x, axis=1, keepdims=True))
        s_sc[...] = (s_sc[...] * jnp.exp(m_prev - m_new)
                     + jnp.sum(jnp.exp(x - m_new), axis=1, keepdims=True))
        m_sc[...] = m_new

        @pl.when(ci == pl.num_programs(1) - 1)
        def _():
            lse = m_sc[...] + jnp.log(s_sc[...])                      # (TB, 1)
            loss_row = lse - w_sc[...]                                # (TB, 1)
            # Mask rows past the true batch (select, not multiply, so NaN/Inf
            # garbage in padded rows cannot propagate).
            row = bi * block_b + jax.lax.broadcasted_iota(
                jnp.int32, (block_b, 1), 0)
            loss_row = jnp.where(row < batch, loss_row, 0.0)
            partial = jnp.sum(loss_row) * inv_b
            # Per-tile lane/sublane-dense partial: no cross-step accumulator,
            # so the batch axis can be "parallel" (both TCs on v7x).
            out_ref[...] = jnp.full((1, 8, 128), partial, jnp.float32)

    return kernel


def _choose_blocks(b, c, itemsize, vmem_budget_bytes, block_b, block_c,
                   max_block_c=2048, max_block_b=4096):
    # --- class chunk --------------------------------------------------------
    if block_c is None:
        block_c = c if c <= max_block_c else max_block_c   # 2048 % 128 == 0
    else:
        block_c = int(block_c)
        if block_c >= c:
            block_c = c                                    # full extent is legal
        else:
            assert block_c % 128 == 0, "class chunk must be a multiple of 128"
    # --- batch tile ---------------------------------------------------------
    # VMEM bytes per batch row: logits double buffer + ~4 f32 temporaries per
    # element (x, w, w*x, exp(x-m)) + lane-padded targets + f32 scratch rows.
    per_row = block_c * (2 * itemsize + 16) + 2 * 512 + 3 * 512
    pack = max(8, 32 // itemsize)           # sublane pack of the input dtype
    if block_b is None:
        block_b = max(int(vmem_budget_bytes) // per_row, pack)
        block_b = min(block_b, max_block_b)
    if block_b >= b:
        block_b = b                         # full extent is always legal
    else:
        block_b = max((int(block_b) // pack) * pack, pack)
    return int(block_b), int(block_c), int(per_row)


def cross_entropy_label_smooth(inputs, targets, *, num_classes, epsilon,
                               block_b=None, block_c=None,
                               vmem_budget_bytes=32 << 20):
    """Label-smoothed cross entropy.

    inputs:  (B, C) logits (any float dtype; bf16 streams without upcast).
    targets: (B,) integer class ids.  Returns scalar float32 loss matching
    CrossEntropyLabelSmooth.forward.

    vmem_budget_bytes sizes the batch tile; 32 MiB is safe on every
    generation (v7x has 64 MiB physical VMEM).  Raise toward 64-96 MiB on
    v5e/v6e for maximum HBM-roofline tiles.
    """
    b, c = inputs.shape
    assert c == num_classes, (c, num_classes)
    targets_2d = targets.astype(jnp.int32).reshape(b, 1)
    itemsize = inputs.dtype.itemsize

    tb, ck, per_row = _choose_blocks(b, c, itemsize, vmem_budget_bytes,
                                     block_b, block_c)
    num_b_tiles = pl.cdiv(b, tb)
    num_c_tiles = pl.cdiv(c, ck)

    kernel = _make_ce_label_smooth_kernel(num_classes, float(epsilon), b, tb,
                                          ck, num_c_tiles)

    # Scoped-VMEM limit sized to this kernel's real working set.
    vmem_limit = int(min(max(tb * per_row + (2 << 20), 16 << 20), 56 << 20))

    cost = pl.CostEstimate(
        flops=8 * b * c,
        transcendentals=b * c,                 # one exp per logit
        bytes_accessed=b * c * itemsize + b * 4 + num_b_tiles * 8 * 128 * 4,
    )

    out = pl.pallas_call(
        kernel,
        out_shape=jax.ShapeDtypeStruct((num_b_tiles, 8, 128), jnp.float32),
        grid=(num_b_tiles, num_c_tiles),
        in_specs=[
            pl.BlockSpec((tb, ck), lambda i, j: (i, j)),   # logits chunk (native dtype)
            pl.BlockSpec((tb, 1), lambda i, j: (i, 0)),    # int32 targets
        ],
        out_specs=pl.BlockSpec((1, 8, 128), lambda i, j: (i, 0, 0)),
        scratch_shapes=[
            pltpu.VMEM((tb, 1), jnp.float32),   # running max
            pltpu.VMEM((tb, 1), jnp.float32),   # running sum-exp
            pltpu.VMEM((tb, 1), jnp.float32),   # running weighted sum
        ],
        compiler_params=pltpu.CompilerParams(
            dimension_semantics=("parallel", "arbitrary"),
            vmem_limit_bytes=vmem_limit,
        ),
        cost_estimate=cost,
    )(inputs, targets_2d)

    return jnp.sum(out[:, 0, 0])


def _reference(inputs, targets, num_classes, epsilon):
    x = inputs.astype(jnp.float32)
    log_probs = jax.nn.log_softmax(x, axis=1)
    one_hot = jax.nn.one_hot(targets, num_classes, dtype=jnp.float32)
    smoothed = (1.0 - epsilon) * one_hot + epsilon / num_classes
    return jnp.sum(jnp.mean(-smoothed * log_probs, axis=0))


if __name__ == "__main__":
    epsilon = 0.1
    key = jax.random.PRNGKey(0)
    keys = jax.random.split(key, 8)

    # Test 1: small f32 batch, single tile on both axes.
    b1, c1 = 8, 128
    logits1 = jax.random.normal(keys[0], (b1, c1), dtype=jnp.float32)
    targets1 = jax.random.randint(keys[1], (b1,), 0, c1, dtype=jnp.int32)
    loss1 = jax.block_until_ready(
        cross_entropy_label_smooth(logits1, targets1,
                                   num_classes=c1, epsilon=epsilon))
    ref1 = _reference(logits1, targets1, c1, epsilon)
    assert jnp.allclose(loss1, ref1, atol=1e-4, rtol=1e-4), (loss1, ref1)

    # Test 2: bf16 logits straight into the kernel, batch not a multiple of
    # the tile -> two "parallel" batch tiles + row masking.
    b2, c2 = 20, 128
    logits2 = (jax.random.normal(keys[2], (b2, c2), dtype=jnp.float32)
               * 3.0).astype(jnp.bfloat16)
    targets2 = jax.random.randint(keys[3], (b2,), 0, c2, dtype=jnp.int32)
    loss2 = jax.block_until_ready(
        cross_entropy_label_smooth(logits2, targets2,
                                   num_classes=c2, epsilon=epsilon,
                                   block_b=16))
    ref2 = _reference(logits2, targets2, c2, epsilon)
    assert jnp.allclose(loss2, ref2, atol=1e-3, rtol=1e-3), (loss2, ref2)

    # Test 3: class-chunked online log-sum-exp (3 aligned class chunks).
    b3, c3 = 24, 384
    logits3 = jax.random.normal(keys[4], (b3, c3), dtype=jnp.float32) * 2.0
    targets3 = jax.random.randint(keys[5], (b3,), 0, c3, dtype=jnp.int32)
    loss3 = jax.block_until_ready(
        cross_entropy_label_smooth(logits3, targets3,
                                   num_classes=c3, epsilon=epsilon,
                                   block_c=128))
    ref3 = _reference(logits3, targets3, c3, epsilon)
    assert jnp.allclose(loss3, ref3, atol=1e-4, rtol=1e-4), (loss3, ref3)

    # Test 4: C not a multiple of the class chunk -> padded-column masking.
    b4, c4 = 12, 200
    logits4 = jax.random.normal(keys[6], (b4, c4), dtype=jnp.float32)
    targets4 = jax.random.randint(keys[7], (b4,), 0, c4, dtype=jnp.int32)
    loss4 = jax.block_until_ready(
        cross_entropy_label_smooth(logits4, targets4,
                                   num_classes=c4, epsilon=epsilon,
                                   block_c=128))
    ref4 = _reference(logits4, targets4, c4, epsilon)
    assert jnp.allclose(loss4, ref4, atol=1e-4, rtol=1e-4), (loss4, ref4)

    print("KERNEL_OK")
</pallas_src>

<mosaic_0001>
module attributes {stable_mosaic.version = 11 : i64} {
  func.func @kernel(%arg0: i32, %arg1: i32, %arg2: memref<8x128xf32, #tpu.memory_space<vmem>>, %arg3: memref<8x1xi32, #tpu.memory_space<vmem>>, %arg4: memref<1x8x128xf32, #tpu.memory_space<vmem>>, %arg5: memref<8x1xf32, #tpu.memory_space<vmem>>, %arg6: memref<8x1xf32, #tpu.memory_space<vmem>>, %arg7: memref<8x1xf32, #tpu.memory_space<vmem>>) attributes {dimension_semantics = [#tpu.dimension_semantics<parallel>, #tpu.dimension_semantics<arbitrary>], iteration_bounds = array<i64: 1, 1>, scalar_prefetch = 0 : i64, scratch_operands = 3 : i64, tpu.core_type = #tpu.core_type<tc>, window_params = [{transform_indices = @transform_0, window_bounds = array<i64: 8, 128>}, {transform_indices = @transform_1, window_bounds = array<i64: 8, 1>}, {transform_indices = @transform_2, window_bounds = array<i64: 1, 8, 128>}]} {
    %c0_i32 = arith.constant 0 : i32
    %0 = arith.cmpi eq, %arg1, %c0_i32 : i32
    %1 = arith.extui %0 : i1 to i32
    %c0_i32_0 = arith.constant 0 : i32
    %2 = arith.cmpi ne, %1, %c0_i32_0 : i32
    scf.if %2 {
      %cst_22 = arith.constant 0xFF800000 : f32
      %40 = vector.broadcast %cst_22 : f32 to vector<8x1xf32>
      %c0_23 = arith.constant 0 : index
      %c0_24 = arith.constant 0 : index
      %41 = vector.load %arg5[%c0_23, %c0_24] : memref<8x1xf32, #tpu.memory_space<vmem>>, vector<8x1xf32>
      tpu.vector_store %arg5[%c0_23, %c0_24], %40 {strides = array<i32>} : memref<8x1xf32, #tpu.memory_space<vmem>>, vector<8x1xf32>,
      %cst_25 = arith.constant 0.000000e+00 : f32
      %42 = vector.broadcast %cst_25 : f32 to vector<8x1xf32>
      %c0_26 = arith.constant 0 : index
      %c0_27 = arith.constant 0 : index
      %43 = vector.load %arg6[%c0_26, %c0_27] : memref<8x1xf32, #tpu.memory_space<vmem>>, vector<8x1xf32>
      tpu.vector_store %arg6[%c0_26, %c0_27], %42 {strides = array<i32>} : memref<8x1xf32, #tpu.memory_space<vmem>>, vector<8x1xf32>,
      %cst_28 = arith.constant 0.000000e+00 : f32
      %44 = vector.broadcast %cst_28 : f32 to vector<8x1xf32>
      %c0_29 = arith.constant 0 : index
      %c0_30 = arith.constant 0 : index
      %45 = vector.load %arg7[%c0_29, %c0_30] : memref<8x1xf32, #tpu.memory_space<vmem>>, vector<8x1xf32>
      tpu.vector_store %arg7[%c0_29, %c0_30], %44 {strides = array<i32>} : memref<8x1xf32, #tpu.memory_space<vmem>>, vector<8x1xf32>,
    } else {
    }
    %c0 = arith.constant 0 : index
    %c0_1 = arith.constant 0 : index
    %3 = vector.load %arg2[%c0, %c0_1] : memref<8x128xf32, #tpu.memory_space<vmem>>, vector<8x128xf32>
    %c0_2 = arith.constant 0 : index
    %c0_3 = arith.constant 0 : index
    %4 = vector.load %arg3[%c0_2, %c0_3] : memref<8x1xi32, #tpu.memory_space<vmem>>, vector<8x1xi32>
    %c128_i32 = arith.constant 128 : i32
    %5 = arith.muli %arg1, %c128_i32 : i32
    %6 = tpu.iota {dimensions = array<i32: 1>} : vector<1x128xi32>
    %7 = vector.broadcast %5 : i32 to vector<1x128xi32>
    %8 = arith.addi %7, %6 : vector<1x128xi32>
    %9 = vector.broadcast %8 : vector<1x128xi32> to vector<8x128xi32>
    %10 = vector.broadcast %4 : vector<8x1xi32> to vector<8x128xi32>
    %11 = arith.cmpi eq, %9, %10 : vector<8x128xi32>
    %cst = arith.constant 0.900781273 : f32
    %cst_4 = arith.constant 7.812500e-04 : f32
    %12 = vector.broadcast %cst : f32 to vector<8x128xf32>
    %13 = vector.broadcast %cst_4 : f32 to vector<8x128xf32>
    %14 = arith.select %11, %12, %13 : vector<8x128xi1>, vector<8x128xf32>
    %c0_5 = arith.constant 0 : index
    %c0_6 = arith.constant 0 : index
    %15 = vector.load %arg7[%c0_5, %c0_6] : memref<8x1xf32, #tpu.memory_space<vmem>>, vector<8x1xf32>
    %16 = arith.mulf %14, %3 : vector<8x128xf32>
    %cst_7 = arith.constant dense<0.000000e+00> : vector<8xf32>
    %17 = vector.multi_reduction <add>, %16, %cst_7 [1] : vector<8x128xf32> to vector<8xf32>
    %18 = vector.shape_cast %17 : vector<8xf32> to vector<8x1xf32>
    %19 = arith.addf %15, %18 : vector<8x1xf32>
    %c0_8 = arith.constant 0 : index
    %c0_9 = arith.constant 0 : index
    %20 = vector.load %arg7[%c0_8, %c0_9] : memref<8x1xf32, #tpu.memory_space<vmem>>, vector<8x1xf32>
    tpu.vector_store %arg7[%c0_8, %c0_9], %19 {strides = array<i32>} : memref<8x1xf32, #tpu.memory_space<vmem>>, vector<8x1xf32>,
    %c0_10 = arith.constant 0 : index
    %c0_11 = arith.constant 0 : index
    %21 = vector.load %arg5[%c0_10, %c0_11] : memref<8x1xf32, #tpu.memory_space<vmem>>, vector<8x1xf32>
    %cst_12 = arith.constant dense<0xFF800000> : vector<8xf32>
    %22 = vector.multi_reduction <maximumf>, %3, %cst_12 [1] : vector<8x128xf32> to vector<8xf32>
    %23 = vector.shape_cast %22 : vector<8xf32> to vector<8x1xf32>
    %24 = arith.maximumf %21, %23 : vector<8x1xf32>
    %c0_13 = arith.constant 0 : index
    %c0_14 = arith.constant 0 : index
    %25 = vector.load %arg6[%c0_13, %c0_14] : memref<8x1xf32, #tpu.memory_space<vmem>>, vector<8x1xf32>
    %26 = arith.subf %21, %24 : vector<8x1xf32>
    %27 = math.exp %26 : vector<8x1xf32>
    %28 = arith.mulf %25, %27 : vector<8x1xf32>
    %29 = vector.broadcast %24 : vector<8x1xf32> to vector<8x128xf32>
    %30 = arith.subf %3, %29 : vector<8x128xf32>
    %31 = math.exp %30 : vector<8x128xf32>
    %cst_15 = arith.constant dense<0.000000e+00> : vector<8xf32>
    %32 = vector.multi_reduction <add>, %31, %cst_15 [1] : vector<8x128xf32> to vector<8xf32>
    %33 = vector.shape_cast %32 : vector<8xf32> to vector<8x1xf32>
    %34 = arith.addf %28, %33 : vector<8x1xf32>
    %c0_16 = arith.constant 0 : index
    %c0_17 = arith.constant 0 : index
    %35 = vector.load %arg6[%c0_16, %c0_17] : memref<8x1xf32, #tpu.memory_space<vmem>>, vector<8x1xf32>
    tpu.vector_store %arg6[%c0_16, %c0_17], %34 {strides = array<i32>} : memref<8x1xf32, #tpu.memory_space<vmem>>, vector<8x1xf32>,
    %c0_18 = arith.constant 0 : index
    %c0_19 = arith.constant 0 : index
    %36 = vector.load %arg5[%c0_18, %c0_19] : memref<8x1xf32, #tpu.memory_space<vmem>>, vector<8x1xf32>
    tpu.vector_store %arg5[%c0_18, %c0_19], %24 {strides = array<i32>} : memref<8x1xf32, #tpu.memory_space<vmem>>, vector<8x1xf32>,
    %c0_i32_20 = arith.constant 0 : i32
    %37 = arith.cmpi eq, %arg1, %c0_i32_20 : i32
    %38 = arith.extui %37 : i1 to i32
    %c0_i32_21 = arith.constant 0 : i32
    %39 = arith.cmpi ne, %38, %c0_i32_21 : i32
    scf.if %39 {
      %c0_22 = arith.constant 0 : index
      %c0_23 = arith.constant 0 : index
      %40 = vector.load %arg5[%c0_22, %c0_23] : memref<8x1xf32, #tpu.memory_space<vmem>>, vector<8x1xf32>
      %c0_24 = arith.constant 0 : index
      %c0_25 = arith.constant 0 : index
      %41 = vector.load %arg6[%c0_24, %c0_25] : memref<8x1xf32, #tpu.memory_space<vmem>>, vector<8x1xf32>
      %42 = math.log %41 : vector<8x1xf32>
      %43 = arith.addf %40, %42 : vector<8x1xf32>
      %c0_26 = arith.constant 0 : index
      %c0_27 = arith.constant 0 : index
      %44 = vector.load %arg7[%c0_26, %c0_27] : memref<8x1xf32, #tpu.memory_space<vmem>>, vector<8x1xf32>
      %45 = arith.subf %43, %44 : vector<8x1xf32>
      %c8_i32 = arith.constant 8 : i32
      %46 = arith.muli %arg0, %c8_i32 : i32
      %47 = tpu.iota {dimensions = array<i32: 0>} : vector<8x1xi32>
      %48 = vector.broadcast %46 : i32 to vector<8x1xi32>
      %49 = arith.addi %48, %47 : vector<8x1xi32>
      %c8_i32_28 = arith.constant 8 : i32
      %50 = vector.broadcast %c8_i32_28 : i32 to vector<8x1xi32>
      %51 = arith.cmpi slt, %49, %50 : vector<8x1xi32>
      %cst_29 = arith.constant 0.000000e+00 : f32
      %52 = vector.broadcast %cst_29 : f32 to vector<8x1xf32>
      %53 = arith.select %51, %45, %52 : vector<8x1xi1>, vector<8x1xf32>
      %54 = vector.shape_cast %53 : vector<8x1xf32> to vector<1x8x1xf32>
      %cst_30 = arith.constant dense<0.000000e+00> : vector<1xf32>
      %55 = vector.multi_reduction <add>, %54, %cst_30 [1, 2] : vector<1x8x1xf32> to vector<1xf32>
      %56 = vector.shape_cast %55 : vector<1xf32> to vector<1x1x1xf32>
      %57 = vector.extract %56[0, 0, 0] : f32 from vector<1x1x1xf32>
      %cst_31 = arith.constant 1.250000e-01 : f32
      %58 = arith.mulf %57, %cst_31 : f32
      %59 = vector.broadcast %58 : f32 to vector<1x8x128xf32>
      %c0_32 = arith.constant 0 : index
      %c0_33 = arith.constant 0 : index
      %c0_34 = arith.constant 0 : index
      %60 = vector.load %arg4[%c0_32, %c0_33, %c0_34] : memref<1x8x128xf32, #tpu.memory_space<vmem>>, vector<1x8x128xf32>
      tpu.vector_store %arg4[%c0_32, %c0_33, %c0_34], %59 {strides = array<i32>} : memref<1x8x128xf32, #tpu.memory_space<vmem>>, vector<1x8x128xf32>,
    } else {
    }
    return
  }
  func.func @transform_0(%arg0: i32, %arg1: i32) -> (i32, i32) {
    %c0_i32 = arith.constant 0 : i32
    return %arg0, %arg1 : i32, i32
  }
  func.func @transform_1(%arg0: i32, %arg1: i32) -> (i32, i32) {
    %c0_i32 = arith.constant 0 : i32
    %c0_i32_0 = arith.constant 0 : i32
    return %arg0, %c0_i32 : i32, i32
  }
  func.func @transform_2(%arg0: i32, %arg1: i32) -> (i32, i32, i32) {
    %c0_i32 = arith.constant 0 : i32
    %c0_i32_0 = arith.constant 0 : i32
    %c0_i32_1 = arith.constant 0 : i32
    return %arg0, %c0_i32, %c0_i32_0 : i32, i32, i32
  }
}

</mosaic_0001>

<llo_original>
// kernel: tpu_custom_call.1
$region0: #{tpu_custom_call.1}
  #allocation0 [shape = 'u32[]', space=smem, size = 0x4, offset = 0x4, fixed_abs, tag = 'smem constant byte address 0x4 - core index']
  #allocation1 [shape = 'u32[144,128]{1,0:T(1,128)}', space=vmem, size = 0x12000, scoped, tag = 'internal scratch']
  #allocation2 [shape = 'f32[8,1]{1,0:T(8,128)}', space=vmem, size = 0x1000, scoped, tag = 'scratch operand']
  #allocation3 [shape = 'f32[8,1]{1,0:T(8,128)}', space=vmem, size = 0x1000, scoped, tag = 'scratch operand']
  #allocation4 [shape = 'f32[8,1]{1,0:T(8,128)}', space=vmem, size = 0x1000, scoped, tag = 'scratch operand']
  %s0 = inlined_call_operand.vmem [shape: f32[8,128], index: 0, kind: input, shape index: {}]
  %s1 = inlined_call_operand.vmem [shape: s32[8,1], index: 1, kind: input, shape index: {}]
  %s2 = inlined_call_operand.hbm [shape: f32[1,8,128], index: 2, kind: output, shape index: {}]
  %s3 = sld [smem:[#allocation0]]
  $region26: #{tpu_custom_call.1} parent=0
    _
  %s5 = ssub.s32 1, %s3
  %s6 = scalar_select 0, %s5, %s3
  $region1: #{tpu_custom_call.1} parent=0
    #allocation5 [shape = 'u8[4096]{0}', space=vmem, size = 0x1000, scoped, tag = 'output window, operand 0, single buffered']
    #allocation6 [shape = 's32[1]{0}', space=sflag, size = 0x4, scoped, tag = 'scoped memory for tpu_custom_call.1']
    %7 = vsyncpa [#allocation6], 0
    // Predicated region
    $region2: #{tpu_custom_call.1} parent=1 // pred_check
      _
    $region3: #{tpu_custom_call.1} parent=1 // pred_check_branch
      %9 = sbr.rel (0) target = $region5
    $region4: #{tpu_custom_call.1} parent=1 // pred_region
      _
    $region5: #{tpu_custom_call.1} parent=1 // pred_fallthru
      _
    // Predicated region
    $region6: #{tpu_custom_call.1} parent=1 // pred_check
      _
    $region7: #{tpu_custom_call.1} parent=1 // pred_check_branch
      %11 = sbr.rel (0) target = $region9
    $region8: #{tpu_custom_call.1} parent=1 // pred_region
      _
    $region9: #{tpu_custom_call.1} parent=1 // pred_fallthru
      _
    %p12 = scmp.eq.s32.totalorder 0, 0
    // Predicated region
    $region10: #{tpu_custom_call.1} parent=1 // pred_check
      %p13 = pneg %p12
    $region11: #{tpu_custom_call.1} parent=1 // pred_check_branch
      %15 = sbr.rel (%p13) target = $region13
    $region12: #{tpu_custom_call.1} parent=1 // pred_region
      %vm16 = vcmask 7168
      %17 = vst.msk [vmem:[#allocation2] sm:$0xff] %vm16, -inf
      %18 = vst.msk [vmem:[#allocation3] sm:$0xff] %vm16, 0.0
      %19 = vst.msk [vmem:[#allocation4] sm:$0xff] %vm16, 0.0
    $region13: #{tpu_custom_call.1} parent=1 // pred_fallthru
      _
    %v20 = vld [vmem:[%s0] sm:$0xff]
    %v21 = vld [vmem:[%s1] sm:$0xff]
    %s22 = smul.u32 0, 128
    %v23 = vlaneseq
    %v24 = vand.u32 %v23, 127
    %v25 = vstv %s22
    %v26 = vadd.s32 %v25, %v24
    %27 = vset.pattern.permute.xlu0 0
    %28 = vperm.xlu0 %27, %v21
    %v29 = vpop.permute.xlu0 %28
    %vm30 = vcmp.eq.s32.totalorder %v26, %v29
    %v31 = vsel %vm30, 0.9007813, 0.00078125
    %v32 = vld [vmem:[#allocation4] sm:$0xff]
    %v33 = vmul.f32 %v31, %v20
    %34 = vadd.xlane.f32.xlu0 %v33
    %v35 = vpop.xlane.xlu0 %34
    %v36 = vadd.f32 %v32, %v35
    %vm37 = vcmask 7168
    %38 = vst.msk [vmem:[#allocation4] sm:$0xff] %vm37, %v36
    %v39 = vld [vmem:[#allocation2] sm:$0xff]
    %40 = vmax.xlane.f32.xlu0 %v20
    %v41 = vpop.xlane.xlu0 %40
    %v42 = vmax.f32 %v39, %v41
    %v43 = vld [vmem:[#allocation3] sm:$0xff]
    %v44 = vsub.f32 %v39, %v42
    %v45 = vmul.f32 %v44, 1.442695
    %v46 = vpow.pop %v45
    %v47 = vmul.f32 %v43, %v46
    %49 = vset.pattern.permute.xlu0 0
    %50 = vperm.xlu0 %49, %v42
    %v51 = vpop.permute.xlu0 %50
    %v53 = vsub.f32 %v20, %v51
    %v54 = vmul.f32 %v53, 1.442695
    %v55 = vpow.pop %v54
    %56 = vadd.xlane.f32.xlu0 %v55
    %v57 = vpop.xlane.xlu0 %56
    %v58 = vadd.f32 %v47, %v57
    %59 = vst.msk [vmem:[#allocation3] sm:$0xff] %vm37, %v58
    %60 = vst.msk [vmem:[#allocation2] sm:$0xff] %vm37, %v42
    // Predicated region
    $region14: #{tpu_custom_call.1} parent=1 // pred_check
      %p61 = pneg %p12
    $region15: #{tpu_custom_call.1} parent=1 // pred_check_branch
      %63 = sbr.rel (%p61) target = $region17
    $region16: #{tpu_custom_call.1} parent=1 // pred_region
      %v64 = vld [vmem:[#allocation2] sm:$0xff]
      %v65 = vld [vmem:[#allocation3] sm:$0xff]
      %v66 = vlog2.pop %v65
      %v67 = vmul.f32 %v66, 0.6931472
      %v68 = vadd.f32 %v64, %v67
      %v69 = vld [vmem:[#allocation4] sm:$0xff]
      %v70 = vsub.f32 %v68, %v69
      %s71 = smul.u32 0, 8
      %v72 = vlaneseq
      %v73 = vshrl.u32 %v72, 7
      %v74 = vstv %s71
      %v75 = vadd.s32 %v74, %v73
      %vm76 = vcmp.lt.s32.totalorder %v75, 8
      %v77 = vsel %vm76, %v70, 0.0
      %v78 = vsel %vm37, %v77, 0.0
      %79 = vadd.xlane.f32.xlu0 %v78
      %v80 = vpop.xlane.xlu0 %79
      %v81 = vrot.slane %v80, 4
      %v82 = vadd.f32 %v80, %v81
      %v83 = vrot.slane %v82, 2
      %v84 = vadd.f32 %v82, %v83
      %v85 = vrot.slane %v84, 1
      %v86 = vadd.f32 %v84, %v85
      %s87 = vtos %v86
      %s88 = smul.f32 %s87, 0.125
      %v89 = vstv %s88
      %90 = vst [vmem:[#allocation5] sm:$0xff] %v89
    $region17: #{tpu_custom_call.1} parent=1 // pred_fallthru
      _
    // Predicated region
    $region18: #{tpu_custom_call.1} parent=1 // pred_check
      _
    $region19: #{tpu_custom_call.1} parent=1 // pred_check_branch
      %92 = sbr.rel (0) target = $region21
    $region20: #{tpu_custom_call.1} parent=1 // pred_region
      %s94 = ssub.s32 128, 128
      %95 = vsyncadd [#allocation6], %s94
      %s97 = sshll.u32 [#allocation5], 4
      %s98 = int_to_ptr.vmem [resolvable:$true] %s97
      %100 = dma.vmem_to_hbm [thread:$0]  %s98, 128, %s2, [#allocation6]
    $region21: #{tpu_custom_call.1} parent=1 // pred_fallthru
      _
    // Predicated region
    $region22: #{tpu_custom_call.1} parent=1 // pred_check
      _
    $region23: #{tpu_custom_call.1} parent=1 // pred_check_branch
      %102 = sbr.rel (0) target = $region25
    $region24: #{tpu_custom_call.1} parent=1 // pred_region
      %103 = dma.done [#allocation6], 128
    $region25: #{tpu_custom_call.1} parent=1 // pred_fallthru
      _
    %104 = vsyncpa [#allocation6], 1

</llo_original>
